<compile_context>
chip_gen: v7x
topology: tpu7x:2x2x1
jax: 0.10.0
libtpu: 0.0.40
codegen_flags: <defaults>
</compile_context>

<pallas_src>
import jax
import jax.numpy as jnp
from jax.experimental import pallas as pl
from jax.experimental.pallas import tpu as pltpu


def _bottleneck_kernel(x_ref, w1_ref, t0_ref, dw_ref, t1_ref, w3_ref, b3_ref,
                       o_ref):
    # x block: (1, Cin, L)  -> (Cin, L), f32 math in-kernel (bf16 only in HBM).
    x = x_ref[0].astype(jnp.float32)

    # ---- conv1 (1x1 pointwise) + folded BN0 + ReLU -------------------------
    # (H, Cin) @ (Cin, L) -> (H, L); lane-dense along L.
    y = jnp.dot(w1_ref[...], x, preferred_element_type=jnp.float32)
    y = jnp.maximum(y + t0_ref[...], 0.0)                       # t0: (H, 1)

    # ---- conv2 (depthwise, k=3, pad=1, stride=1) + folded BN1 + ReLU -------
    # Shifts along the lane axis; the zero column IS the Conv1d zero padding,
    # so no halo fetches / edge masking are needed.
    zc = jnp.zeros((y.shape[0], 1), jnp.float32)
    y_prev = jnp.concatenate([zc, y[:, :-1]], axis=1)           # y[:, l-1]
    y_next = jnp.concatenate([y[:, 1:], zc], axis=1)            # y[:, l+1]
    dw = dw_ref[...]                                            # (H, 3)
    z = y_prev * dw[:, 0:1] + y * dw[:, 1:2] + y_next * dw[:, 2:3]
    z = jnp.maximum(z + t1_ref[...], 0.0)                       # t1: (H, 1)

    # ---- conv3 (1x1 pointwise) + bias + residual (dropout = identity) ------
    out = jnp.dot(w3_ref[...], z, preferred_element_type=jnp.float32)
    out = out + b3_ref[...]                                     # b3: (Cout, 1)
    o_ref[0] = (x + out).astype(o_ref.dtype)


def _vmem_budget_bytes():
    """Generation-aware (working-set cap, vmem_limit) in bytes."""
    try:
        cap = int(pltpu.get_tpu_info().vmem_capacity_bytes)
    except Exception:
        cap = 64 << 20                      # conservative fallback (v7x-sized)
    if cap <= (64 << 20):                   # v7x: 64 MiB physical per TC
        return 28 << 20, 40 << 20
    return 56 << 20, 64 << 20               # v5e / v6e: 128 MiB physical


def bottleneck_pallas(x_ncl, params):
    """x_ncl: (N, Cin, L) in PyTorch NCL layout (bf16 or f32).

    Returns (N, Cout, L) in the same dtype as x_ncl.
    """
    N, Cin, L = x_ncl.shape
    w1, t0, dw, t1, w3, b3 = params
    H = w1.shape[0]
    Cout = w3.shape[0]

    # stride==1 residual path of the PyTorch module requires matching channels.
    assert Cin == Cout, "stride=1 Bottleneck residual requires in_channel == out_channel"
    # TODO(synk): stride>1 (no-residual) branch not implemented.

    budget, vmem_limit = _vmem_budget_bytes()
    io_bytes = jnp.dtype(x_ncl.dtype).itemsize
    # Rough model: double-buffered x/out blocks + ~6 f32 (H, L) intermediates.
    working = 2 * Cin * L * io_bytes + 2 * Cout * L * io_bytes + 6 * H * L * 4
    if working > budget:
        # TODO(synk): L-tiled variant with a carried 1-column halo for very long L.
        raise NotImplementedError("sequence too long for single-block VMEM budget")

    full = lambda n: (0, 0)   # weights resident across the grid

    return pl.pallas_call(
        _bottleneck_kernel,
        out_shape=jax.ShapeDtypeStruct((N, Cout, L), x_ncl.dtype),
        grid_spec=pltpu.PrefetchScalarGridSpec(
            num_scalar_prefetch=0,
            grid=(N,),
            in_specs=[
                pl.BlockSpec((1, Cin, L), lambda n: (n, 0, 0)),   # x
                pl.BlockSpec((H, Cin), full),                     # w1 (BN0 folded)
                pl.BlockSpec((H, 1), full),                       # t0
                pl.BlockSpec((H, 3), full),                       # depthwise taps (BN1 folded)
                pl.BlockSpec((H, 1), full),                       # t1
                pl.BlockSpec((Cout, H), full),                    # w3
                pl.BlockSpec((Cout, 1), full),                    # b3
            ],
            out_specs=pl.BlockSpec((1, Cout, L), lambda n: (n, 0, 0)),
        ),
        compiler_params=pltpu.CompilerParams(
            # Batch axis is independent -> shardable across v7x's 2 TensorCores.
            dimension_semantics=("parallel",),
            vmem_limit_bytes=vmem_limit,
        ),
    )(x_ncl, w1, t0, dw, t1, w3, b3)


def make_params(key, in_channel, out_channel, expansion, eps=1e-5):
    """Deterministic synthetic parameters; eval-mode BatchNorm (with nontrivial
    running mean/var) folded into the conv weights/biases (all f32)."""
    H = in_channel * expansion
    ks = jax.random.split(key, 14)
    nrm = lambda k, s: jax.random.normal(k, s, jnp.float32)

    # Conv1d weights in PyTorch-like shapes (kernel dim squeezed):
    w1 = 0.1 * nrm(ks[0], (H, in_channel))        # conv1 (H, Cin, 1)
    b1 = 0.1 * nrm(ks[1], (H,))
    w2 = 0.1 * nrm(ks[2], (H, 3))                 # conv2 depthwise (H, 1, 3)
    b2 = 0.1 * nrm(ks[3], (H,))
    w3 = 0.1 * nrm(ks[4], (out_channel, H))       # conv3 (Cout, H, 1)
    b3 = 0.1 * nrm(ks[5], (out_channel,))

    # BatchNorm params with NONTRIVIAL running statistics (exercises the fold).
    g0 = 1.0 + 0.1 * nrm(ks[6], (H,));  be0 = 0.1 * nrm(ks[7], (H,))
    g1 = 1.0 + 0.1 * nrm(ks[8], (H,));  be1 = 0.1 * nrm(ks[9], (H,))
    m0 = 0.2 * nrm(ks[10], (H,))
    v0 = jax.random.uniform(ks[11], (H,), jnp.float32, 0.5, 1.5)
    m1 = 0.2 * nrm(ks[12], (H,))
    v1 = jax.random.uniform(ks[13], (H,), jnp.float32, 0.5, 1.5)

    scale0 = g0 / jnp.sqrt(v0 + eps); shift0 = be0 - m0 * scale0
    scale1 = g1 / jnp.sqrt(v1 + eps); shift1 = be1 - m1 * scale1

    # Fold: BN(conv(x) + b) = (scale*w) conv x + (scale*b + shift).  Kept f32.
    kernel_params = (
        w1 * scale0[:, None],                      # (H, Cin)
        (scale0 * b1 + shift0)[:, None],           # (H, 1)
        w2 * scale1[:, None],                      # (H, 3)
        (scale1 * b2 + shift1)[:, None],           # (H, 1)
        w3,                                        # (Cout, H)
        b3[:, None],                               # (Cout, 1)
    )
    torch_like = dict(w1=w1, b1=b1, w2=w2, b2=b2, w3=w3, b3=b3,
                      g0=g0, be0=be0, m0=m0, v0=v0,
                      g1=g1, be1=be1, m1=m1, v1=v1, eps=eps)
    return kernel_params, torch_like


def reference_forward(x_ncl, p):
    """Pure-JAX f32 reference of the PyTorch forward (eval BN, identity dropout)."""
    eps = p["eps"]

    def bn(y, g, be, m, v):
        return (g[None, :, None] * (y - m[None, :, None])
                / jnp.sqrt(v[None, :, None] + eps) + be[None, :, None])

    y = jnp.einsum("hc,ncl->nhl", p["w1"], x_ncl) + p["b1"][None, :, None]
    y = jnp.maximum(bn(y, p["g0"], p["be0"], p["m0"], p["v0"]), 0.0)
    ypad = jnp.pad(y, ((0, 0), (0, 0), (1, 1)))
    y = (p["w2"][None, :, 0, None] * ypad[:, :, :-2]
         + p["w2"][None, :, 1, None] * ypad[:, :, 1:-1]
         + p["w2"][None, :, 2, None] * ypad[:, :, 2:]) + p["b2"][None, :, None]
    y = jnp.maximum(bn(y, p["g1"], p["be1"], p["m1"], p["v1"]), 0.0)
    y = jnp.einsum("oh,nhl->nol", p["w3"], y) + p["b3"][None, :, None]
    return x_ncl + y


if __name__ == "__main__":
    # Small shapes consistent with the module: stride=1, padding=1, act=ReLU.
    N, Cin, Cout, expansion, L = 2, 4, 4, 2, 16

    key = jax.random.PRNGKey(0)
    kx, kp = jax.random.split(key)
    x_f32 = jax.random.normal(kx, (N, Cin, L), jnp.float32)   # PyTorch NCL layout
    x_bf16 = x_f32.astype(jnp.bfloat16)                       # bf16 HBM I/O (perf)

    kernel_params, torch_like = make_params(kp, Cin, Cout, expansion)

    out = bottleneck_pallas(x_bf16, kernel_params)
    out = jax.block_until_ready(out)
    assert out.shape == (N, Cout, L) and out.dtype == jnp.bfloat16

    # Reference runs in f32 on the same (bf16-rounded) input; only the final
    # bf16 output store differs, so a modest tolerance suffices.
    ref = reference_forward(x_bf16.astype(jnp.float32), torch_like)
    out_f32 = out.astype(jnp.float32)
    max_err = jnp.max(jnp.abs(out_f32 - ref))
    assert jnp.allclose(out_f32, ref, atol=2e-2, rtol=2e-2), (
        f"mismatch vs reference, max abs err = {max_err}")

    print("KERNEL_OK")
</pallas_src>

<mosaic_0001>
module attributes {stable_mosaic.version = 11 : i64} {
  func.func @_bottleneck_kernel(%arg0: i32, %arg1: memref<1x4x16xbf16, #tpu.memory_space<vmem>>, %arg2: memref<8x4xf32, #tpu.memory_space<vmem>>, %arg3: memref<8x1xf32, #tpu.memory_space<vmem>>, %arg4: memref<8x3xf32, #tpu.memory_space<vmem>>, %arg5: memref<8x1xf32, #tpu.memory_space<vmem>>, %arg6: memref<4x8xf32, #tpu.memory_space<vmem>>, %arg7: memref<4x1xf32, #tpu.memory_space<vmem>>, %arg8: memref<1x4x16xbf16, #tpu.memory_space<vmem>>) attributes {dimension_semantics = [#tpu.dimension_semantics<parallel>], iteration_bounds = array<i64: 2>, scalar_prefetch = 0 : i64, scratch_operands = 0 : i64, tpu.core_type = #tpu.core_type<tc>, window_params = [{transform_indices = @transform_0, window_bounds = array<i64: 1, 4, 16>}, {pipeline_mode = #tpu.pipeline_mode<synchronous>, transform_indices = @transform_1, window_bounds = array<i64: 8, 4>}, {pipeline_mode = #tpu.pipeline_mode<synchronous>, transform_indices = @transform_2, window_bounds = array<i64: 8, 1>}, {pipeline_mode = #tpu.pipeline_mode<synchronous>, transform_indices = @transform_3, window_bounds = array<i64: 8, 3>}, {pipeline_mode = #tpu.pipeline_mode<synchronous>, transform_indices = @transform_4, window_bounds = array<i64: 8, 1>}, {pipeline_mode = #tpu.pipeline_mode<synchronous>, transform_indices = @transform_5, window_bounds = array<i64: 4, 8>}, {pipeline_mode = #tpu.pipeline_mode<synchronous>, transform_indices = @transform_6, window_bounds = array<i64: 4, 1>}, {transform_indices = @transform_7, window_bounds = array<i64: 1, 4, 16>}]} {
    %c0 = arith.constant 0 : index
    %c0_0 = arith.constant 0 : index
    %c0_1 = arith.constant 0 : index
    %0 = vector.load %arg1[%c0, %c0_0, %c0_1] : memref<1x4x16xbf16, #tpu.memory_space<vmem>>, vector<1x4x16xbf16>
    %1 = vector.shape_cast %0 : vector<1x4x16xbf16> to vector<4x16xbf16>
    %2 = arith.extf %1 : vector<4x16xbf16> to vector<4x16xf32>
    %c0_2 = arith.constant 0 : index
    %c0_3 = arith.constant 0 : index
    %3 = vector.load %arg2[%c0_2, %c0_3] : memref<8x4xf32, #tpu.memory_space<vmem>>, vector<8x4xf32>
    %cst = arith.constant dense<0.000000e+00> : vector<8x16xf32>
    %4 = tpu.matmul %3, %2, %cst {dimension_numbers = #tpu.dot_dimension_numbers<[1], [0], [0], [1], [0, 0, 1, 1], [], []>} : vector<8x4xf32>, vector<4x16xf32>, vector<8x16xf32> -> vector<8x16xf32>
    %c0_4 = arith.constant 0 : index
    %c0_5 = arith.constant 0 : index
    %5 = vector.load %arg3[%c0_4, %c0_5] : memref<8x1xf32, #tpu.memory_space<vmem>>, vector<8x1xf32>
    %6 = vector.broadcast %5 : vector<8x1xf32> to vector<8x16xf32>
    %7 = arith.addf %4, %6 : vector<8x16xf32>
    %cst_6 = arith.constant 0.000000e+00 : f32
    %8 = vector.broadcast %cst_6 : f32 to vector<8x16xf32>
    %9 = arith.maximumf %7, %8 : vector<8x16xf32>
    %cst_7 = arith.constant 0.000000e+00 : f32
    %10 = vector.broadcast %cst_7 : f32 to vector<8x1xf32>
    %11 = vector.extract_strided_slice %9 {offsets = [0, 0], sizes = [8, 15], strides = [1, 1]} : vector<8x16xf32> to vector<8x15xf32>
    %12 = tpu.concatenate %10, %11 in 1 : vector<8x1xf32>, vector<8x15xf32> -> vector<8x16xf32>
    %13 = vector.extract_strided_slice %9 {offsets = [0, 1], sizes = [8, 15], strides = [1, 1]} : vector<8x16xf32> to vector<8x15xf32>
    %14 = tpu.concatenate %13, %10 in 1 : vector<8x15xf32>, vector<8x1xf32> -> vector<8x16xf32>
    %c0_8 = arith.constant 0 : index
    %c0_9 = arith.constant 0 : index
    %15 = vector.load %arg4[%c0_8, %c0_9] : memref<8x3xf32, #tpu.memory_space<vmem>>, vector<8x3xf32>
    %16 = vector.extract_strided_slice %15 {offsets = [0, 0], sizes = [8, 1], strides = [1, 1]} : vector<8x3xf32> to vector<8x1xf32>
    %17 = vector.broadcast %16 : vector<8x1xf32> to vector<8x16xf32>
    %18 = arith.mulf %12, %17 : vector<8x16xf32>
    %19 = vector.extract_strided_slice %15 {offsets = [0, 1], sizes = [8, 1], strides = [1, 1]} : vector<8x3xf32> to vector<8x1xf32>
    %20 = vector.broadcast %19 : vector<8x1xf32> to vector<8x16xf32>
    %21 = arith.mulf %9, %20 : vector<8x16xf32>
    %22 = arith.addf %18, %21 : vector<8x16xf32>
    %23 = vector.extract_strided_slice %15 {offsets = [0, 2], sizes = [8, 1], strides = [1, 1]} : vector<8x3xf32> to vector<8x1xf32>
    %24 = vector.broadcast %23 : vector<8x1xf32> to vector<8x16xf32>
    %25 = arith.mulf %14, %24 : vector<8x16xf32>
    %26 = arith.addf %22, %25 : vector<8x16xf32>
    %c0_10 = arith.constant 0 : index
    %c0_11 = arith.constant 0 : index
    %27 = vector.load %arg5[%c0_10, %c0_11] : memref<8x1xf32, #tpu.memory_space<vmem>>, vector<8x1xf32>
    %28 = vector.broadcast %27 : vector<8x1xf32> to vector<8x16xf32>
    %29 = arith.addf %26, %28 : vector<8x16xf32>
    %cst_12 = arith.constant 0.000000e+00 : f32
    %30 = vector.broadcast %cst_12 : f32 to vector<8x16xf32>
    %31 = arith.maximumf %29, %30 : vector<8x16xf32>
    %c0_13 = arith.constant 0 : index
    %c0_14 = arith.constant 0 : index
    %32 = vector.load %arg6[%c0_13, %c0_14] : memref<4x8xf32, #tpu.memory_space<vmem>>, vector<4x8xf32>
    %cst_15 = arith.constant dense<0.000000e+00> : vector<4x16xf32>
    %33 = tpu.matmul %32, %31, %cst_15 {dimension_numbers = #tpu.dot_dimension_numbers<[1], [0], [0], [1], [0, 0, 1, 1], [], []>} : vector<4x8xf32>, vector<8x16xf32>, vector<4x16xf32> -> vector<4x16xf32>
    %c0_16 = arith.constant 0 : index
    %c0_17 = arith.constant 0 : index
    %34 = vector.load %arg7[%c0_16, %c0_17] : memref<4x1xf32, #tpu.memory_space<vmem>>, vector<4x1xf32>
    %35 = vector.broadcast %34 : vector<4x1xf32> to vector<4x16xf32>
    %36 = arith.addf %33, %35 : vector<4x16xf32>
    %37 = arith.addf %2, %36 : vector<4x16xf32>
    %38 = arith.truncf %37 : vector<4x16xf32> to vector<4x16xbf16>
    %c0_18 = arith.constant 0 : index
    %c0_19 = arith.constant 0 : index
    %c0_20 = arith.constant 0 : index
    %39 = vector.load %arg8[%c0_18, %c0_19, %c0_20] : memref<1x4x16xbf16, #tpu.memory_space<vmem>>, vector<1x4x16xbf16>
    %40 = vector.shape_cast %39 : vector<1x4x16xbf16> to vector<4x16xbf16>
    %41 = vector.shape_cast %38 : vector<4x16xbf16> to vector<1x4x16xbf16>
    tpu.vector_store %arg8[%c0_18, %c0_19, %c0_20], %41 {strides = array<i32>} : memref<1x4x16xbf16, #tpu.memory_space<vmem>>, vector<1x4x16xbf16>,
    return
  }
  func.func @transform_0(%arg0: i32) -> (i32, i32, i32) {
    %c0_i32 = arith.constant 0 : i32
    %c0_i32_0 = arith.constant 0 : i32
    %c0_i32_1 = arith.constant 0 : i32
    return %arg0, %c0_i32, %c0_i32_0 : i32, i32, i32
  }
  func.func @transform_1(%arg0: i32) -> (i32, i32) {
    %c0_i32 = arith.constant 0 : i32
    %c0_i32_0 = arith.constant 0 : i32
    %c0_i32_1 = arith.constant 0 : i32
    return %c0_i32, %c0_i32_0 : i32, i32
  }
  func.func @transform_2(%arg0: i32) -> (i32, i32) {
    %c0_i32 = arith.constant 0 : i32
    %c0_i32_0 = arith.constant 0 : i32
    %c0_i32_1 = arith.constant 0 : i32
    return %c0_i32, %c0_i32_0 : i32, i32
  }
  func.func @transform_3(%arg0: i32) -> (i32, i32) {
    %c0_i32 = arith.constant 0 : i32
    %c0_i32_0 = arith.constant 0 : i32
    %c0_i32_1 = arith.constant 0 : i32
    return %c0_i32, %c0_i32_0 : i32, i32
  }
  func.func @transform_4(%arg0: i32) -> (i32, i32) {
    %c0_i32 = arith.constant 0 : i32
    %c0_i32_0 = arith.constant 0 : i32
    %c0_i32_1 = arith.constant 0 : i32
    return %c0_i32, %c0_i32_0 : i32, i32
  }
  func.func @transform_5(%arg0: i32) -> (i32, i32) {
    %c0_i32 = arith.constant 0 : i32
    %c0_i32_0 = arith.constant 0 : i32
    %c0_i32_1 = arith.constant 0 : i32
    return %c0_i32, %c0_i32_0 : i32, i32
  }
  func.func @transform_6(%arg0: i32) -> (i32, i32) {
    %c0_i32 = arith.constant 0 : i32
    %c0_i32_0 = arith.constant 0 : i32
    %c0_i32_1 = arith.constant 0 : i32
    return %c0_i32, %c0_i32_0 : i32, i32
  }
  func.func @transform_7(%arg0: i32) -> (i32, i32, i32) {
    %c0_i32 = arith.constant 0 : i32
    %c0_i32_0 = arith.constant 0 : i32
    %c0_i32_1 = arith.constant 0 : i32
    return %arg0, %c0_i32, %c0_i32_0 : i32, i32, i32
  }
}

</mosaic_0001>

<llo_original>
// kernel: tpu_custom_call.1
$region0: #{tpu_custom_call.1}
  #allocation0 [shape = 'u32[]', space=smem, size = 0x4, offset = 0x4, fixed_abs, tag = 'smem constant byte address 0x4 - core index']
  #allocation1 [shape = 'u32[144,128]{1,0:T(1,128)}', space=vmem, size = 0x12000, scoped, tag = 'internal scratch']
  %s0 = inlined_call_operand.vmem [shape: bf16[2,4,16], index: 0, kind: input, shape index: {}]
  %s1 = inlined_call_operand.vmem [shape: f32[8,4], index: 1, kind: input, shape index: {}]
  %s2 = inlined_call_operand.vmem [shape: f32[8,1], index: 2, kind: input, shape index: {}]
  %s3 = inlined_call_operand.vmem [shape: f32[8,3], index: 3, kind: input, shape index: {}]
  %s4 = inlined_call_operand.vmem [shape: f32[8,1], index: 4, kind: input, shape index: {}]
  %s5 = inlined_call_operand.vmem [shape: f32[4,8], index: 5, kind: input, shape index: {}]
  %s6 = inlined_call_operand.vmem [shape: f32[4,1], index: 6, kind: input, shape index: {}]
  %s7 = inlined_call_operand.hbm [shape: bf16[2,4,16], index: 7, kind: output, shape index: {}]
  %s8 = sld [smem:[#allocation0]]
  $region61: #{tpu_custom_call.1} parent=0
    _
  %s10 = ssub.s32 1, %s8
  %s11 = scalar_select 0, %s10, %s8
  $region1: #{tpu_custom_call.1} parent=0
    #allocation2 [shape = 'u8[2048]{0}', space=vmem, size = 0x800, scoped, tag = 'output window, operand 0']
    #allocation3 [shape = 's32[2]{0}', space=sflag, size = 0x8, scoped, tag = 'scoped memory for tpu_custom_call.1']
    %12 = vsyncpa [#allocation3], 0
    %s13 = scalar_lea.sflag [#allocation3], 1
    %14 = vsyncpa %s13, 0
    loop: start=0, step=1, limit=4
    $region2: #{tpu_custom_call.1} parent=1 // loop_pre_header
      _
    $region3: #{tpu_custom_call.1} parent=1 // loop_header
      %s16 = sphi 0, %s20
      %p17 = scmp.ge.s32.totalorder %s16, 4
      %s26 = sphi 0, %s28
      %s29 = sphi 0, %s26
      %s30 = sphi 0, %s29
      %s46 = sphi 0, %s30
      %s50 = sphi 0, %s50
      %s52 = sphi 0, %s50
      %s53 = sphi 0, %s52
      %s67 = sphi 0, %s53
      %s71 = sphi 0, %s71
      %s73 = sphi 0, %s71
      %s74 = sphi 0, %s73
      %s88 = sphi 0, %s74
      %s92 = sphi 0, %s92
      %s94 = sphi 0, %s92
      %s95 = sphi 0, %s94
      %s109 = sphi 0, %s95
      %s113 = sphi 0, %s113
      %s115 = sphi 0, %s113
      %s116 = sphi 0, %s115
      %s130 = sphi 0, %s116
      %s134 = sphi 0, %s134
      %s136 = sphi 0, %s134
      %s137 = sphi 0, %s136
      %s151 = sphi 0, %s137
      %s155 = sphi 0, %s155
      %s157 = sphi 0, %s155
      %s158 = sphi 0, %s157
      %s172 = sphi 0, %s158
      %s178 = sphi 0, %s180
      %s181 = sphi 0, %s178
      %s182 = sphi 0, %s181
      %s198 = sphi 0, %s182
    $region4: #{tpu_custom_call.1} parent=1 // loop_header_branch
      %19 = sbr.rel (%p17) target = $region8
    $region5: #{tpu_custom_call.1} parent=1 // loop_body
      %s21 = ssub.s32 %s16, 1
      %s22 = ssub.s32 %s16, 2
      %s23 = sadd.s32 %s16, 1
      %s24 = ssub.s32 %s16, %s23
      %p25 = scmp.eq.s32.totalorder %s24, 0
      %s27 = sadd.s32 %s26, 1
      %s28 = scalar_select %p25, %s26, %s27
      %p31 = pneg %p25
      %p32 = scmp.eq.s32.totalorder %s16, 1
      %p33 = por %p31, %p32
      %p34 = scmp.ne.s32.totalorder %s26, %s29
      %p35 = scmp.eq.s32.totalorder %s16, 0
      %p36 = por %p34, %p35
      %p37 = scmp.ne.s32.totalorder %s26, %s29
      %p38 = scmp.eq.s32.totalorder %s21, 1
      %p39 = por %p37, %p38
      %p40 = scmp.ne.s32.totalorder %s29, %s30
      %p41 = scmp.eq.s32.totalorder %s21, 0
      %p42 = por %p40, %p41
      %p43 = scmp.ne.s32.totalorder %s29, %s30
      %p44 = scmp.eq.s32.totalorder %s22, 1
      %p45 = por %p43, %p44
      %p47 = scmp.ne.s32.totalorder %s30, %s46
      %p48 = scmp.eq.s32.totalorder %s22, 0
      %p49 = por %p47, %p48
      %s51 = sadd.s32 %s50, 1
      %p54 = scmp.eq.s32.totalorder %s16, 1
      %p55 = scmp.ne.s32.totalorder %s50, %s52
      %p56 = scmp.eq.s32.totalorder %s16, 0
      %p57 = por %p55, %p56
      %p58 = scmp.ne.s32.totalorder %s50, %s52
      %p59 = scmp.eq.s32.totalorder %s21, 1
      %p60 = por %p58, %p59
      %p61 = scmp.ne.s32.totalorder %s52, %s53
      %p62 = scmp.eq.s32.totalorder %s21, 0
      %p63 = por %p61, %p62
      %p64 = scmp.ne.s32.totalorder %s52, %s53
      %p65 = scmp.eq.s32.totalorder %s22, 1
      %p66 = por %p64, %p65
      %p68 = scmp.ne.s32.totalorder %s53, %s67
      %p69 = scmp.eq.s32.totalorder %s22, 0
      %p70 = por %p68, %p69
      %s72 = sadd.s32 %s71, 1
      %p75 = scmp.eq.s32.totalorder %s16, 1
      %p76 = scmp.ne.s32.totalorder %s71, %s73
      %p77 = scmp.eq.s32.totalorder %s16, 0
      %p78 = por %p76, %p77
      %p79 = scmp.ne.s32.totalorder %s71, %s73
      %p80 = scmp.eq.s32.totalorder %s21, 1
      %p81 = por %p79, %p80
      %p82 = scmp.ne.s32.totalorder %s73, %s74
      %p83 = scmp.eq.s32.totalorder %s21, 0
      %p84 = por %p82, %p83
      %p85 = scmp.ne.s32.totalorder %s73, %s74
      %p86 = scmp.eq.s32.totalorder %s22, 1
      %p87 = por %p85, %p86
      %p89 = scmp.ne.s32.totalorder %s74, %s88
      %p90 = scmp.eq.s32.totalorder %s22, 0
      %p91 = por %p89, %p90
      %s93 = sadd.s32 %s92, 1
      %p96 = scmp.eq.s32.totalorder %s16, 1
      %p97 = scmp.ne.s32.totalorder %s92, %s94
      %p98 = scmp.eq.s32.totalorder %s16, 0
      %p99 = por %p97, %p98
      %p100 = scmp.ne.s32.totalorder %s92, %s94
      %p101 = scmp.eq.s32.totalorder %s21, 1
      %p102 = por %p100, %p101
      %p103 = scmp.ne.s32.totalorder %s94, %s95
      %p104 = scmp.eq.s32.totalorder %s21, 0
      %p105 = por %p103, %p104
      %p106 = scmp.ne.s32.totalorder %s94, %s95
      %p107 = scmp.eq.s32.totalorder %s22, 1
      %p108 = por %p106, %p107
      %p110 = scmp.ne.s32.totalorder %s95, %s109
      %p111 = scmp.eq.s32.totalorder %s22, 0
      %p112 = por %p110, %p111
      %s114 = sadd.s32 %s113, 1
      %p117 = scmp.eq.s32.totalorder %s16, 1
      %p118 = scmp.ne.s32.totalorder %s113, %s115
      %p119 = scmp.eq.s32.totalorder %s16, 0
      %p120 = por %p118, %p119
      %p121 = scmp.ne.s32.totalorder %s113, %s115
      %p122 = scmp.eq.s32.totalorder %s21, 1
      %p123 = por %p121, %p122
      %p124 = scmp.ne.s32.totalorder %s115, %s116
      %p125 = scmp.eq.s32.totalorder %s21, 0
      %p126 = por %p124, %p125
      %p127 = scmp.ne.s32.totalorder %s115, %s116
      %p128 = scmp.eq.s32.totalorder %s22, 1
      %p129 = por %p127, %p128
      %p131 = scmp.ne.s32.totalorder %s116, %s130
      %p132 = scmp.eq.s32.totalorder %s22, 0
      %p133 = por %p131, %p132
      %s135 = sadd.s32 %s134, 1
      %p138 = scmp.eq.s32.totalorder %s16, 1
      %p139 = scmp.ne.s32.totalorder %s134, %s136
      %p140 = scmp.eq.s32.totalorder %s16, 0
      %p141 = por %p139, %p140
      %p142 = scmp.ne.s32.totalorder %s134, %s136
      %p143 = scmp.eq.s32.totalorder %s21, 1
      %p144 = por %p142, %p143
      %p145 = scmp.ne.s32.totalorder %s136, %s137
      %p146 = scmp.eq.s32.totalorder %s21, 0
      %p147 = por %p145, %p146
      %p148 = scmp.ne.s32.totalorder %s136, %s137
      %p149 = scmp.eq.s32.totalorder %s22, 1
      %p150 = por %p148, %p149
      %p152 = scmp.ne.s32.totalorder %s137, %s151
      %p153 = scmp.eq.s32.totalorder %s22, 0
      %p154 = por %p152, %p153
      %s156 = sadd.s32 %s155, 1
      %p159 = scmp.eq.s32.totalorder %s16, 1
      %p160 = scmp.ne.s32.totalorder %s155, %s157
      %p161 = scmp.eq.s32.totalorder %s16, 0
      %p162 = por %p160, %p161
      %p163 = scmp.ne.s32.totalorder %s155, %s157
      %p164 = scmp.eq.s32.totalorder %s21, 1
      %p165 = por %p163, %p164
      %p166 = scmp.ne.s32.totalorder %s157, %s158
      %p167 = scmp.eq.s32.totalorder %s21, 0
      %p168 = por %p166, %p167
      %p169 = scmp.ne.s32.totalorder %s157, %s158
      %p170 = scmp.eq.s32.totalorder %s22, 1
      %p171 = por %p169, %p170
      %p173 = scmp.ne.s32.totalorder %s158, %s172
      %p174 = scmp.eq.s32.totalorder %s22, 0
      %p175 = por %p173, %p174
      %s176 = ssub.s32 %s16, %s23
      %p177 = scmp.eq.s32.totalorder %s176, 0
      %s179 = sadd.s32 %s178, 1
      %s180 = scalar_select %p177, %s178, %s179
      %p183 = pneg %p177
      %p184 = scmp.eq.s32.totalorder %s16, 1
      %p185 = por %p183, %p184
      %p186 = scmp.ne.s32.totalorder %s178, %s181
      %p187 = scmp.eq.s32.totalorder %s16, 0
      %p188 = por %p186, %p187
      %p189 = scmp.ne.s32.totalorder %s178, %s181
      %p190 = scmp.eq.s32.totalorder %s21, 1
      %p191 = por %p189, %p190
      %p192 = scmp.ne.s32.totalorder %s181, %s182
      %p193 = scmp.eq.s32.totalorder %s21, 0
      %p194 = por %p192, %p193
      %p195 = scmp.ne.s32.totalorder %s181, %s182
      %p196 = scmp.eq.s32.totalorder %s22, 1
      %p197 = por %p195, %p196
      %p199 = scmp.ne.s32.totalorder %s182, %s198
      %p200 = scmp.eq.s32.totalorder %s22, 0
      %p201 = por %p199, %p200
      %p202 = scmp.le.s32.totalorder 1, %s16
      %p203 = scmp.lt.s32.totalorder %s16, 3
      %p204 = pnand %p202, %p203
      %p205 = pneg %p204
      // Predicated region
      $region9: #{tpu_custom_call.1} parent=5 // pred_check
        _
      $region10: #{tpu_custom_call.1} parent=5 // pred_check_branch
        %207 = sbr.rel (%p204) target = $region12
      $region11: #{tpu_custom_call.1} parent=5 // pred_region
        %s208 = ssub.s32 %s16, 1
        // Predicated region
        $region13: #{tpu_custom_call.1} parent=11 // pred_check
          %p209 = pneg %p63
        $region14: #{tpu_custom_call.1} parent=11 // pred_check_branch
          %211 = sbr.rel (%p209) target = $region16
        $region15: #{tpu_custom_call.1} parent=11 // pred_region
          _
        $region16: #{tpu_custom_call.1} parent=11 // pred_fallthru
          _
        // Predicated region
        $region17: #{tpu_custom_call.1} parent=11 // pred_check
          %p212 = pneg %p84
        $region18: #{tpu_custom_call.1} parent=11 // pred_check_branch
          %214 = sbr.rel (%p212) target = $region20
        $region19: #{tpu_custom_call.1} parent=11 // pred_region
          _
        $region20: #{tpu_custom_call.1} parent=11 // pred_fallthru
          _
        // Predicated region
        $region21: #{tpu_custom_call.1} parent=11 // pred_check
          %p215 = pneg %p105
        $region22: #{tpu_custom_call.1} parent=11 // pred_check_branch
          %217 = sbr.rel (%p215) target = $region24
        $region23: #{tpu_custom_call.1} parent=11 // pred_region
          _
        $region24: #{tpu_custom_call.1} parent=11 // pred_fallthru
          _
        // Predicated region
        $region25: #{tpu_custom_call.1} parent=11 // pred_check
          %p218 = pneg %p126
        $region26: #{tpu_custom_call.1} parent=11 // pred_check_branch
          %220 = sbr.rel (%p218) target = $region28
        $region27: #{tpu_custom_call.1} parent=11 // pred_region
          _
        $region28: #{tpu_custom_call.1} parent=11 // pred_fallthru
          _
        // Predicated region
        $region29: #{tpu_custom_call.1} parent=11 // pred_check
          %p221 = pneg %p147
        $region30: #{tpu_custom_call.1} parent=11 // pred_check_branch
          %223 = sbr.rel (%p221) target = $region32
        $region31: #{tpu_custom_call.1} parent=11 // pred_region
          _
        $region32: #{tpu_custom_call.1} parent=11 // pred_fallthru
          _
        // Predicated region
        $region33: #{tpu_custom_call.1} parent=11 // pred_check
          %p224 = pneg %p168
        $region34: #{tpu_custom_call.1} parent=11 // pred_check_branch
          %226 = sbr.rel (%p224) target = $region36
        $region35: #{tpu_custom_call.1} parent=11 // pred_region
          _
        $region36: #{tpu_custom_call.1} parent=11 // pred_fallthru
          _
      $region12: #{tpu_custom_call.1} parent=5 // pred_fallthru
        _
      %p227 = scmp.lt.s32.totalorder %s16, 2
      // Predicated region
      $region37: #{tpu_custom_call.1} parent=5 // pred_check
        %p228 = pneg %p227
      $region38: #{tpu_custom_call.1} parent=5 // pred_check_branch
        %230 = sbr.rel (%p228) target = $region40
      $region39: #{tpu_custom_call.1} parent=5 // pred_region
        // Predicated region
        $region41: #{tpu_custom_call.1} parent=39 // pred_check
          %p231 = pneg %p36
        $region42: #{tpu_custom_call.1} parent=39 // pred_check_branch
          %233 = sbr.rel (%p231) target = $region44
        $region43: #{tpu_custom_call.1} parent=39 // pred_region
          %p234 = scmp.lt.s32.totalorder %s16, 1
          %s235 = scalar_select %p234, %s16, 1
          %s236 = smul.addr %s235, 2
          %s237 = scalar_lea.vmem %s0, %s236
        $region44: #{tpu_custom_call.1} parent=39 // pred_fallthru
          _
      $region40: #{tpu_custom_call.1} parent=5 // pred_fallthru
        _
      %p238 = scmp.le.s32.totalorder 1, %s16
      %p239 = scmp.lt.s32.totalorder %s16, 3
      %p240 = pnand %p238, %p239
      %p241 = pneg %p240
      // Predicated region
      $region45: #{tpu_custom_call.1} parent=5 // pred_check
        _
      $region46: #{tpu_custom_call.1} parent=5 // pred_check_branch
        %243 = sbr.rel (%p240) target = $region48
      $region47: #{tpu_custom_call.1} parent=5 // pred_region
        %s244 = ssub.s32 %s16, 1
        %p245 = scmp.lt.s32.totalorder %s21, 1
        %s246 = scalar_select %p245, %s21, 1
        %s247 = smul.addr %s246, 2
        %s248 = scalar_lea.vmem %s0, %s247
        %p249 = pneg %p42
        %p250 = pneg %p39
        %p251 = pneg %p63
        %p252 = pneg %p60
        %p253 = pneg %p84
        %p254 = pneg %p81
        %p255 = pneg %p105
        %p256 = pneg %p102
        %p257 = pneg %p126
        %p258 = pneg %p123
        %p259 = pneg %p147
        %p260 = pneg %p144
        %p261 = pneg %p168
        %p262 = pneg %p165
        %p263 = pneg %p194
        %p264 = pneg %p191
        %s265 = sand.u32 %s181, 1
        %s266 = scalar_lea.sflag [#allocation3], %s265
        %s267 = sand.u32 %s181, 1
        %s268 = smul.addr %s267, 2
        %s269 = scalar_lea.vmem [#allocation2], %s268
        %p270 = scmp.lt.s32.totalorder %s21, 1
        %s271 = scalar_select %p270, %s21, 1
        %s272 = smul.addr %s271, 2
        %s273 = scalar_lea.vmem %s0, %s272
        %v274 = vld [vmem:[%s273] sm:$0x3]
        %v275 = vunpack.c.l.bf16 %v274
        %v276 = vld [vmem:[%s1] sm:$0xff]
        %v277 = vld [vmem:[%s2] sm:$0xff]
        %279 = vset.pattern.permute.xlu0 0
        %280 = vperm.xlu0 %279, %v277
        %v281 = vpop.permute.xlu0 %280
        %vm283 = vcmask 31744
        %v285 = vsel %vm283, %v276, 0
        %vm287 = vcmask 1043456
        %v289 = vsel %vm287, %v275, 0
        %291 = vmatprep.subr.mxu0 0.0
        %292 = vmatpush1.msra.mxu0 %v289
        %293 = vmatprep.subr.mxu0 0.0
        %294 = vmatpush1.msra.mxu0 0.0
        %295 = vmatprep.subr.mxu0 0.0
        %296 = vmatpush1.msra.mxu0 0.0
        %297 = vmatprep.subr.mxu0 0.0
        %298 = vmatpush1.msra.mxu0 0.0
        %299 = vmatprep.subr.mxu0 0.0
        %300 = vmatpush1.msra.mxu0 0.0
        %301 = vmatprep.subr.mxu0 0.0
        %302 = vmatpush1.msra.mxu0 0.0
        %303 = vmatprep.subr.mxu0 0.0
        %304 = vmatpush1.msra.mxu0 0.0
        %305 = vmatprep.subr.mxu0 0.0
        %306 = vmatpush1.msra.mxu0 0.0
        %307 = vmatprep.subr.mxu0 0.0
        %308 = vmatpush1.msra.mxu0 0.0
        %309 = vmatprep.subr.mxu0 0.0
        %310 = vmatpush1.msra.mxu0 0.0
        %311 = vmatprep.subr.mxu0 0.0
        %312 = vmatpush1.msra.mxu0 0.0
        %313 = vmatprep.subr.mxu0 0.0
        %314 = vmatpush1.msra.mxu0 0.0
        %315 = vmatprep.subr.mxu0 0.0
        %316 = vmatpush1.msra.mxu0 0.0
        %317 = vmatprep.subr.mxu0 0.0
        %318 = vmatpush1.msra.mxu0 0.0
        %319 = vmatprep.subr.mxu0 0.0
        %320 = vmatpush1.msra.mxu0 0.0
        %321 = vmatprep.subr.mxu0 0.0
        %322 = vmatpush1.msra.mxu0 0.0
        %323 = vmatprep.subr.mxu0 0.0
        %324 = vmatpush1.msra.mxu0 0.0
        %325 = vmatprep.subr.mxu0 0.0
        %326 = vmatpush1.msra.mxu0 0.0
        %327 = vmatprep.subr.mxu0 0.0
        %328 = vmatpush1.msra.mxu0 0.0
        %329 = vmatprep.subr.mxu0 0.0
        %330 = vmatpush1.msra.mxu0 0.0
        %331 = vmatprep.subr.mxu0 0.0
        %332 = vmatpush1.msra.mxu0 0.0
        %333 = vmatprep.subr.mxu0 0.0
        %334 = vmatpush1.msra.mxu0 0.0
        %335 = vmatprep.subr.mxu0 0.0
        %336 = vmatpush1.msra.mxu0 0.0
        %337 = vmatprep.subr.mxu0 0.0
        %338 = vmatpush1.msra.mxu0 0.0
        %339 = vmatprep.subr.mxu0 0.0
        %340 = vmatpush1.msra.mxu0 0.0
        %341 = vmatprep.subr.mxu0 0.0
        %342 = vmatpush1.msra.mxu0 0.0
        %343 = vmatprep.subr.mxu0 0.0
        %344 = vmatpush1.msra.mxu0 0.0
        %345 = vmatprep.subr.mxu0 0.0
        %346 = vmatpush1.msra.mxu0 0.0
        %347 = vmatprep.subr.mxu0 0.0
        %348 = vmatpush1.msra.mxu0 0.0
        %349 = vmatprep.subr.mxu0 0.0
        %350 = vmatpush1.msra.mxu0 0.0
        %351 = vmatprep.subr.mxu0 0.0
        %352 = vmatpush1.msra.mxu0 0.0
        %353 = vmatprep.subr.mxu0 0.0
        %354 = vmatpush1.msra.mxu0 0.0
        %355 = vmatprep.mubr.f32.mxu0 0.0
        %356 = vmatmul.mubr.f32.gmra.mrb[0].mxu0 %v285
        %v357 = vpop.f32.mrb[0].mxu0
        %v358 = vadd.f32 %v281, %v357
        %v359 = vpop.f32.mrb[0].mxu0
        %360 = vdwg.mxu0
        %v361 = vmax.f32 %v358, 0.0
        %363 = vrot.lane.b32.xlu0 %v361, 1
        %v364 = vpop.permute.xlu0 %363
        %vm366 = vcmask 7168
        %v367 = vsel %vm366, 0.0, %v364
        %368 = vrot.lane.b32.xlu0 %v361, 127
        %v369 = vpop.permute.xlu0 %368
        %vm371 = vcmask 121856
        %v372 = vsel %vm371, %v369, 0.0
        %v373 = vld [vmem:[%s3] sm:$0xff]
        %375 = vset.pattern.permute.xlu0 0
        %376 = vperm.xlu0 %375, %v373
        %v377 = vpop.permute.xlu0 %376
        %v379 = vmul.f32 %v367, %v377
        %380 = vset.pattern.permute.xlu0 1
        %381 = vperm.xlu0 %380, %v373
        %v382 = vpop.permute.xlu0 %381
        %v384 = vmul.f32 %v361, %v382
        %v385 = vadd.f32 %v379, %v384
        %386 = vset.pattern.permute.xlu0 2
        %387 = vperm.xlu0 %386, %v373
        %v388 = vpop.permute.xlu0 %387
        %v390 = vmul.f32 %v372, %v388
        %v391 = vadd.f32 %v385, %v390
        %v392 = vld [vmem:[%s4] sm:$0xff]
        %394 = vset.pattern.permute.xlu0 0
        %395 = vperm.xlu0 %394, %v392
        %v396 = vpop.permute.xlu0 %395
        %v398 = vadd.f32 %v391, %v396
        %v399 = vmax.f32 %v398, 0.0
        %v400 = vld [vmem:[%s5] sm:$0xf]
        %v401 = vld [vmem:[%s6] sm:$0xf]
        %403 = vset.pattern.permute.xlu0 0
        %404 = vperm.xlu0 %403, %v401
        %v405 = vpop.permute.xlu0 %404
        %vm407 = vcmask 64512
        %v409 = vsel %vm407, %v400, 0
        %411 = vmatprep.subr.mxu0 0.0
        %412 = vmatpush1.msra.mxu0 %v399
        %413 = vmatprep.subr.mxu0 0.0
        %414 = vmatpush1.msra.mxu0 0.0
        %415 = vmatprep.subr.mxu0 0.0
        %416 = vmatpush1.msra.mxu0 0.0
        %417 = vmatprep.subr.mxu0 0.0
        %418 = vmatpush1.msra.mxu0 0.0
        %419 = vmatprep.subr.mxu0 0.0
        %420 = vmatpush1.msra.mxu0 0.0
        %421 = vmatprep.subr.mxu0 0.0
        %422 = vmatpush1.msra.mxu0 0.0
        %423 = vmatprep.subr.mxu0 0.0
        %424 = vmatpush1.msra.mxu0 0.0
        %425 = vmatprep.subr.mxu0 0.0
        %426 = vmatpush1.msra.mxu0 0.0
        %427 = vmatprep.subr.mxu0 0.0
        %428 = vmatpush1.msra.mxu0 0.0
        %429 = vmatprep.subr.mxu0 0.0
        %430 = vmatpush1.msra.mxu0 0.0
        %431 = vmatprep.subr.mxu0 0.0
        %432 = vmatpush1.msra.mxu0 0.0
        %433 = vmatprep.subr.mxu0 0.0
        %434 = vmatpush1.msra.mxu0 0.0
        %435 = vmatprep.subr.mxu0 0.0
        %436 = vmatpush1.msra.mxu0 0.0
        %437 = vmatprep.subr.mxu0 0.0
        %438 = vmatpush1.msra.mxu0 0.0
        %439 = vmatprep.subr.mxu0 0.0
        %440 = vmatpush1.msra.mxu0 0.0
        %441 = vmatprep.subr.mxu0 0.0
        %442 = vmatpush1.msra.mxu0 0.0
        %443 = vmatprep.subr.mxu0 0.0
        %444 = vmatpush1.msra.mxu0 0.0
        %445 = vmatprep.subr.mxu0 0.0
        %446 = vmatpush1.msra.mxu0 0.0
        %447 = vmatprep.subr.mxu0 0.0
        %448 = vmatpush1.msra.mxu0 0.0
        %449 = vmatprep.subr.mxu0 0.0
        %450 = vmatpush1.msra.mxu0 0.0
        %451 = vmatprep.subr.mxu0 0.0
        %452 = vmatpush1.msra.mxu0 0.0
        %453 = vmatprep.subr.mxu0 0.0
        %454 = vmatpush1.msra.mxu0 0.0
        %455 = vmatprep.subr.mxu0 0.0
        %456 = vmatpush1.msra.mxu0 0.0
        %457 = vmatprep.subr.mxu0 0.0
        %458 = vmatpush1.msra.mxu0 0.0
        %459 = vmatprep.subr.mxu0 0.0
        %460 = vmatpush1.msra.mxu0 0.0
        %461 = vmatprep.subr.mxu0 0.0
        %462 = vmatpush1.msra.mxu0 0.0
        %463 = vmatprep.subr.mxu0 0.0
        %464 = vmatpush1.msra.mxu0 0.0
        %465 = vmatprep.subr.mxu0 0.0
        %466 = vmatpush1.msra.mxu0 0.0
        %467 = vmatprep.subr.mxu0 0.0
        %468 = vmatpush1.msra.mxu0 0.0
        %469 = vmatprep.subr.mxu0 0.0
        %470 = vmatpush1.msra.mxu0 0.0
        %471 = vmatprep.subr.mxu0 0.0
        %472 = vmatpush1.msra.mxu0 0.0
        %473 = vmatprep.subr.mxu0 0.0
        %474 = vmatpush1.msra.mxu0 0.0
        %475 = vmatprep.mubr.f32.mxu0 0.0
        %476 = vmatmul.mubr.f32.gmra.mrb[0].mxu0 %v409
        %v477 = vpop.f32.mrb[0].mxu0
        %v478 = vadd.f32 %v405, %v477
        %v479 = vpop.f32.mrb[0].mxu0
        %480 = vdwg.mxu0
        %v481 = vadd.f32 %v275, %v478
        %v482 = vpack.c.bf16 %v481, %v481
        %vm483 = vcmask 123904
        %484 = vst.msk [vmem:[%s269] sm:$0x3] %vm483, %v482
        %s485 = sand.u32 %s181, 1
        %s486 = scalar_lea.sflag [#allocation3], %s485
        %s487 = sand.u32 %s181, 1
        %s488 = smul.addr %s487, 2
        %s489 = scalar_lea.vmem [#allocation2], %s488
        // Predicated region
        $region49: #{tpu_custom_call.1} parent=47 // pred_check
          %p490 = pneg %p191
        $region50: #{tpu_custom_call.1} parent=47 // pred_check_branch
          %492 = sbr.rel (%p490) target = $region52
        $region51: #{tpu_custom_call.1} parent=47 // pred_region
          %s494 = ssub.s32 32, 32
          %495 = vsyncadd %s486, %s494
          %s496 = smul.addr %s21, 32
          %s497 = scalar_lea.hbm %s7, %s496
          %s499 = sshll.u32 %s489, 4
          %s500 = int_to_ptr.vmem [resolvable:$true] %s499
          %502 = dma.vmem_to_hbm [thread:$0]  %s500, 32, %s497, %s486
        $region52: #{tpu_custom_call.1} parent=47 // pred_fallthru
          _
      $region48: #{tpu_custom_call.1} parent=5 // pred_fallthru
        _
      %p503 = scmp.le.s32.totalorder 2, %s16
      // Predicated region
      $region53: #{tpu_custom_call.1} parent=5 // pred_check
        %p504 = pneg %p503
      $region54: #{tpu_custom_call.1} parent=5 // pred_check_branch
        %506 = sbr.rel (%p504) target = $region56
      $region55: #{tpu_custom_call.1} parent=5 // pred_region
        %s507 = ssub.s32 %s16, 2
        // Predicated region
        $region57: #{tpu_custom_call.1} parent=55 // pred_check
          %p508 = pneg %p197
        $region58: #{tpu_custom_call.1} parent=55 // pred_check_branch
          %510 = sbr.rel (%p508) target = $region60
        $region59: #{tpu_custom_call.1} parent=55 // pred_region
          %s511 = sand.u32 %s182, 1
          %s512 = scalar_lea.sflag [#allocation3], %s511
          %s513 = sand.u32 %s182, 1
          %s514 = smul.addr %s513, 2
          %s515 = scalar_lea.vmem [#allocation2], %s514
          %516 = dma.done %s512, 32
        $region60: #{tpu_custom_call.1} parent=55 // pred_fallthru
          _
      $region56: #{tpu_custom_call.1} parent=5 // pred_fallthru
        _
    $region6: #{tpu_custom_call.1} parent=1 // loop_footer
      %s20 = sadd.s32 1, %s16
    $region7: #{tpu_custom_call.1} parent=1 // loop_footer_branch
      %15 = sbr.rel target = $region3
    $region8: #{tpu_custom_call.1} parent=1 // loop_exit
      _
    %517 = vsyncpa [#allocation3], 1
    %s518 = scalar_lea.sflag [#allocation3], 1
    %519 = vsyncpa %s518, 1

</llo_original>
